<compile_context>
chip_gen: v7x
topology: tpu7x:2x2x1
jax: 0.10.0
libtpu: 0.0.40
codegen_flags: <defaults>
</compile_context>

<pallas_src>
import functools

import jax
import jax.numpy as jnp
from jax.experimental import pallas as pl
from jax.experimental.pallas import tpu as pltpu


def _rup(n, m=128):
    """Round n up to a multiple of m (lane width)."""
    return ((n + m - 1) // m) * m


# ----------------------------- fused kernel -------------------------------- #

def _fused_rbf_kernel(*refs, num_layers, n_norm):
    """refs = [x_ref, (c_t, c2, scale, w_t, b) * num_layers, o_ref].

    x_ref  : (B, Din)        raw input (unpadded)
    c_t    : (K, Cp)         centres^T, zero padded (K = prev padded width)
    c2     : (1, Cp)         ||c||^2 per centre, zero padded
    scale  : (1, Cp)         exp(-2*log_sigma)/C^2, zero padded
    w_t    : (Cp, Dp)        linear weight^T, zero padded
    b      : (1, Dp)         linear bias, zero padded
    o_ref  : (B, Dp_last)    padded output (sliced in the wrapper)
    """
    x_ref = refs[0]
    o_ref = refs[-1]
    layer_refs = refs[1:-1]

    # --- global normalization: (x - mean) / sqrt(unbiased var) ---
    x = x_ref[...].astype(jnp.float32)
    mean = jnp.sum(x) / float(n_norm)
    var = jnp.sum((x - mean) ** 2) / float(n_norm - 1)
    h = (x - mean) / jnp.sqrt(var)

    # --- fused RBF + Linear layers, activation stays in-kernel ---
    for i in range(num_layers):
        c_t_ref, c2_ref, scale_ref, w_t_ref, b_ref = layer_refs[5 * i: 5 * i + 5]
        x2 = jnp.sum(h * h, axis=1, keepdims=True)                         # (B, 1)
        xc = jnp.dot(h, c_t_ref[...], preferred_element_type=jnp.float32)  # (B, Cp) MXU
        d2 = jnp.maximum(x2 + c2_ref[...] - 2.0 * xc, 0.0)                 # squared L2 dist
        # gaussian( dist / sigma / C ) == exp(-d2 * exp(-2*log_sigma) / C^2)
        phi = jnp.exp(-d2 * scale_ref[...])                                # (B, Cp)
        h = jnp.dot(phi, w_t_ref[...], preferred_element_type=jnp.float32) + b_ref[...]

    o_ref[...] = h


# ----------------------------- model wrapper ------------------------------- #

class RBFClassifierPallas:
    """JAX/Pallas port of RBFClassifier (euclidean dist + gaussian basis)."""

    def __init__(self, layer_widths, layer_centres, key):
        self.layer_widths = list(layer_widths)
        self.params = []
        for i in range(len(layer_widths) - 1):
            key, k_c, k_w, k_b = jax.random.split(key, 4)
            din, dout, c = layer_widths[i], layer_widths[i + 1], layer_centres[i]
            centres = jax.random.normal(k_c, (c, din), jnp.float32)        # randn init
            log_sigmas = jnp.zeros((c,), jnp.float32)                      # zeros init
            bound = 1.0 / jnp.sqrt(jnp.array(c, jnp.float32))              # nn.Linear init
            weight = jax.random.uniform(k_w, (dout, c), jnp.float32, -bound, bound)
            bias = jax.random.uniform(k_b, (dout,), jnp.float32, -bound, bound)
            self.params.append((centres, log_sigmas, weight, bias))
        self._prepare()

    def _prepare(self):
        """Host-side one-time layout work: transposes, padding, fused constants."""
        prepared = []
        in_dim = self.layer_widths[0]          # first contraction dim stays unpadded
        for centres, log_sigmas, weight, bias in self.params:
            C, din = centres.shape
            dout = weight.shape[0]
            Cp, Dp = _rup(C), _rup(dout)
            # centres^T, zero padded: padded input rows / centre cols contribute 0.
            c_t = jnp.zeros((in_dim, Cp), jnp.float32).at[:din, :C].set(centres.T)
            c2 = jnp.zeros((1, Cp), jnp.float32).at[:, :C].set(
                jnp.sum(centres * centres, axis=1)[None, :])
            scale = jnp.zeros((1, Cp), jnp.float32).at[:, :C].set(
                (jnp.exp(-2.0 * log_sigmas) / float(C * C))[None, :])
            # padded centres: scale=0 -> phi=1, but weight row is 0 -> no contribution.
            w_t = jnp.zeros((Cp, Dp), jnp.float32).at[:C, :dout].set(weight.T)
            b = jnp.zeros((1, Dp), jnp.float32).at[:, :dout].set(bias[None, :])
            prepared.append((c_t, c2, scale, w_t, b))
            in_dim = Dp                         # next layer consumes the padded activation
        self.prepared = prepared
        self.out_dim_padded = in_dim
        self.out_dim = self.layer_widths[-1]

    def __call__(self, x):
        B, Din = x.shape
        num_layers = len(self.prepared)

        flat_inputs = [x.astype(jnp.float32)]
        in_specs = [pl.BlockSpec((B, Din), lambda i: (0, 0))]
        for layer in self.prepared:
            for arr in layer:
                flat_inputs.append(arr)
                in_specs.append(pl.BlockSpec(arr.shape, lambda i: (0, 0)))

        kernel = functools.partial(
            _fused_rbf_kernel, num_layers=num_layers, n_norm=B * Din)

        out_padded = pl.pallas_call(
            kernel,
            out_shape=jax.ShapeDtypeStruct((B, self.out_dim_padded), jnp.float32),
            grid=(1,),
            in_specs=in_specs,
            out_specs=pl.BlockSpec((B, self.out_dim_padded), lambda i: (0, 0)),
            compiler_params=pltpu.CompilerParams(
                dimension_semantics=("arbitrary",)),
        )(*flat_inputs)
        # TODO(synk): add a batch grid axis ("parallel") + K-block accumulator once
        # batch / centre counts outgrow a single VMEM-resident tile (and 2 TCs on v7x).
        return out_padded[:, : self.out_dim]


# ----------------------------- reference (pure JAX) ------------------------ #

def _reference_forward(model, x):
    xf = x.astype(jnp.float32)
    n = xf.size
    mean = jnp.mean(xf)
    var = jnp.sum((xf - mean) ** 2) / float(n - 1)
    out = (xf - mean) / jnp.sqrt(var)
    for centres, log_sigmas, weight, bias in model.params:
        diff = out[:, None, :] - centres[None, :, :]
        dist = jnp.sqrt(jnp.sum(diff * diff, axis=-1))
        dist = dist / jnp.exp(log_sigmas)[None, :] / float(centres.shape[0])
        phi = jnp.exp(-dist * dist)
        out = phi @ weight.T + bias[None, :]
    return out


# ----------------------------- main ---------------------------------------- #

if __name__ == "__main__":
    key = jax.random.PRNGKey(0)
    key, k_x, k_m = jax.random.split(key, 3)

    # small RBF classifier: 16 -> (64 centres) -> 32 -> (32 centres) -> 8
    layer_widths = [16, 32, 8]
    layer_centres = [64, 32]
    batch = 8

    x = jax.random.normal(k_x, (batch, layer_widths[0]), jnp.float32)
    model = RBFClassifierPallas(layer_widths, layer_centres, k_m)

    out = model(x)
    out = jax.block_until_ready(out)

    ref = _reference_forward(model, x)
    assert out.shape == (batch, layer_widths[-1])
    assert jnp.allclose(out, ref, rtol=1e-4, atol=1e-4), "mismatch vs pure-JAX reference"

    print("KERNEL_OK")
</pallas_src>

<mosaic_0001>
module attributes {stable_mosaic.version = 11 : i64} {
  func.func @_fused_rbf_kernel(%arg0: i32, %arg1: memref<8x16xf32, #tpu.memory_space<vmem>>, %arg2: memref<16x128xf32, #tpu.memory_space<vmem>>, %arg3: memref<1x128xf32, #tpu.memory_space<vmem>>, %arg4: memref<1x128xf32, #tpu.memory_space<vmem>>, %arg5: memref<128x128xf32, #tpu.memory_space<vmem>>, %arg6: memref<1x128xf32, #tpu.memory_space<vmem>>, %arg7: memref<128x128xf32, #tpu.memory_space<vmem>>, %arg8: memref<1x128xf32, #tpu.memory_space<vmem>>, %arg9: memref<1x128xf32, #tpu.memory_space<vmem>>, %arg10: memref<128x128xf32, #tpu.memory_space<vmem>>, %arg11: memref<1x128xf32, #tpu.memory_space<vmem>>, %arg12: memref<8x128xf32, #tpu.memory_space<vmem>>) attributes {dimension_semantics = [#tpu.dimension_semantics<arbitrary>], iteration_bounds = array<i64: 1>, scalar_prefetch = 0 : i64, scratch_operands = 0 : i64, tpu.core_type = #tpu.core_type<tc>, window_params = [{pipeline_mode = #tpu.pipeline_mode<synchronous>, transform_indices = @transform_0, window_bounds = array<i64: 8, 16>}, {pipeline_mode = #tpu.pipeline_mode<synchronous>, transform_indices = @transform_1, window_bounds = array<i64: 16, 128>}, {pipeline_mode = #tpu.pipeline_mode<synchronous>, transform_indices = @transform_2, window_bounds = array<i64: 1, 128>}, {pipeline_mode = #tpu.pipeline_mode<synchronous>, transform_indices = @transform_3, window_bounds = array<i64: 1, 128>}, {pipeline_mode = #tpu.pipeline_mode<synchronous>, transform_indices = @transform_4, window_bounds = array<i64: 128, 128>}, {pipeline_mode = #tpu.pipeline_mode<synchronous>, transform_indices = @transform_5, window_bounds = array<i64: 1, 128>}, {pipeline_mode = #tpu.pipeline_mode<synchronous>, transform_indices = @transform_6, window_bounds = array<i64: 128, 128>}, {pipeline_mode = #tpu.pipeline_mode<synchronous>, transform_indices = @transform_7, window_bounds = array<i64: 1, 128>}, {pipeline_mode = #tpu.pipeline_mode<synchronous>, transform_indices = @transform_8, window_bounds = array<i64: 1, 128>}, {pipeline_mode = #tpu.pipeline_mode<synchronous>, transform_indices = @transform_9, window_bounds = array<i64: 128, 128>}, {pipeline_mode = #tpu.pipeline_mode<synchronous>, transform_indices = @transform_10, window_bounds = array<i64: 1, 128>}, {pipeline_mode = #tpu.pipeline_mode<synchronous>, transform_indices = @transform_11, window_bounds = array<i64: 8, 128>}]} {
    %c0 = arith.constant 0 : index
    %c0_0 = arith.constant 0 : index
    %0 = vector.load %arg1[%c0, %c0_0] : memref<8x16xf32, #tpu.memory_space<vmem>>, vector<8x16xf32>
    %1 = vector.shape_cast %0 : vector<8x16xf32> to vector<1x8x16xf32>
    %cst = arith.constant dense<0.000000e+00> : vector<1xf32>
    %2 = vector.multi_reduction <add>, %1, %cst [1, 2] : vector<1x8x16xf32> to vector<1xf32>
    %3 = vector.shape_cast %2 : vector<1xf32> to vector<1x1x1xf32>
    %4 = vector.extract %3[0, 0, 0] : f32 from vector<1x1x1xf32>
    %cst_1 = arith.constant 1.280000e+02 : f32
    %5 = arith.divf %4, %cst_1 : f32
    %6 = vector.broadcast %5 : f32 to vector<8x16xf32>
    %7 = arith.subf %0, %6 : vector<8x16xf32>
    %8 = arith.mulf %7, %7 : vector<8x16xf32>
    %9 = vector.shape_cast %8 : vector<8x16xf32> to vector<1x8x16xf32>
    %cst_2 = arith.constant dense<0.000000e+00> : vector<1xf32>
    %10 = vector.multi_reduction <add>, %9, %cst_2 [1, 2] : vector<1x8x16xf32> to vector<1xf32>
    %11 = vector.shape_cast %10 : vector<1xf32> to vector<1x1x1xf32>
    %12 = vector.extract %11[0, 0, 0] : f32 from vector<1x1x1xf32>
    %cst_3 = arith.constant 1.270000e+02 : f32
    %13 = arith.divf %12, %cst_3 : f32
    %14 = vector.broadcast %5 : f32 to vector<8x16xf32>
    %15 = arith.subf %0, %14 : vector<8x16xf32>
    %16 = math.sqrt %13 : f32
    %17 = vector.broadcast %16 : f32 to vector<8x16xf32>
    %18 = arith.divf %15, %17 : vector<8x16xf32>
    %19 = arith.mulf %18, %18 : vector<8x16xf32>
    %cst_4 = arith.constant dense<0.000000e+00> : vector<8xf32>
    %20 = vector.multi_reduction <add>, %19, %cst_4 [1] : vector<8x16xf32> to vector<8xf32>
    %21 = vector.shape_cast %20 : vector<8xf32> to vector<8x1xf32>
    %c0_5 = arith.constant 0 : index
    %c0_6 = arith.constant 0 : index
    %22 = vector.load %arg2[%c0_5, %c0_6] : memref<16x128xf32, #tpu.memory_space<vmem>>, vector<16x128xf32>
    %cst_7 = arith.constant dense<0.000000e+00> : vector<8x128xf32>
    %23 = tpu.matmul %18, %22, %cst_7 {dimension_numbers = #tpu.dot_dimension_numbers<[1], [0], [0], [1], [0, 0, 1, 1], [], []>} : vector<8x16xf32>, vector<16x128xf32>, vector<8x128xf32> -> vector<8x128xf32>
    %c0_8 = arith.constant 0 : index
    %c0_9 = arith.constant 0 : index
    %24 = vector.load %arg3[%c0_8, %c0_9] : memref<1x128xf32, #tpu.memory_space<vmem>>, vector<1x128xf32>
    %25 = vector.broadcast %21 : vector<8x1xf32> to vector<8x128xf32>
    %26 = vector.broadcast %24 : vector<1x128xf32> to vector<8x128xf32>
    %27 = arith.addf %25, %26 : vector<8x128xf32>
    %cst_10 = arith.constant 2.000000e+00 : f32
    %28 = vector.broadcast %cst_10 : f32 to vector<8x128xf32>
    %29 = arith.mulf %28, %23 : vector<8x128xf32>
    %30 = arith.subf %27, %29 : vector<8x128xf32>
    %cst_11 = arith.constant 0.000000e+00 : f32
    %31 = vector.broadcast %cst_11 : f32 to vector<8x128xf32>
    %32 = arith.maximumf %30, %31 : vector<8x128xf32>
    %cst_12 = arith.constant 0.000000e+00 : f32
    %33 = vector.broadcast %cst_12 : f32 to vector<8x128xf32>
    %34 = arith.subf %33, %32 : vector<8x128xf32>
    %c0_13 = arith.constant 0 : index
    %c0_14 = arith.constant 0 : index
    %35 = vector.load %arg4[%c0_13, %c0_14] : memref<1x128xf32, #tpu.memory_space<vmem>>, vector<1x128xf32>
    %36 = vector.broadcast %35 : vector<1x128xf32> to vector<8x128xf32>
    %37 = arith.mulf %34, %36 : vector<8x128xf32>
    %38 = math.exp %37 : vector<8x128xf32>
    %c0_15 = arith.constant 0 : index
    %c0_16 = arith.constant 0 : index
    %39 = vector.load %arg5[%c0_15, %c0_16] : memref<128x128xf32, #tpu.memory_space<vmem>>, vector<128x128xf32>
    %cst_17 = arith.constant dense<0.000000e+00> : vector<8x128xf32>
    %40 = tpu.matmul %38, %39, %cst_17 {dimension_numbers = #tpu.dot_dimension_numbers<[1], [0], [0], [1], [0, 0, 1, 1], [], []>} : vector<8x128xf32>, vector<128x128xf32>, vector<8x128xf32> -> vector<8x128xf32>
    %c0_18 = arith.constant 0 : index
    %c0_19 = arith.constant 0 : index
    %41 = vector.load %arg6[%c0_18, %c0_19] : memref<1x128xf32, #tpu.memory_space<vmem>>, vector<1x128xf32>
    %42 = vector.broadcast %41 : vector<1x128xf32> to vector<8x128xf32>
    %43 = arith.addf %40, %42 : vector<8x128xf32>
    %44 = arith.mulf %43, %43 : vector<8x128xf32>
    %cst_20 = arith.constant dense<0.000000e+00> : vector<8xf32>
    %45 = vector.multi_reduction <add>, %44, %cst_20 [1] : vector<8x128xf32> to vector<8xf32>
    %46 = vector.shape_cast %45 : vector<8xf32> to vector<8x1xf32>
    %c0_21 = arith.constant 0 : index
    %c0_22 = arith.constant 0 : index
    %47 = vector.load %arg7[%c0_21, %c0_22] : memref<128x128xf32, #tpu.memory_space<vmem>>, vector<128x128xf32>
    %cst_23 = arith.constant dense<0.000000e+00> : vector<8x128xf32>
    %48 = tpu.matmul %43, %47, %cst_23 {dimension_numbers = #tpu.dot_dimension_numbers<[1], [0], [0], [1], [0, 0, 1, 1], [], []>} : vector<8x128xf32>, vector<128x128xf32>, vector<8x128xf32> -> vector<8x128xf32>
    %c0_24 = arith.constant 0 : index
    %c0_25 = arith.constant 0 : index
    %49 = vector.load %arg8[%c0_24, %c0_25] : memref<1x128xf32, #tpu.memory_space<vmem>>, vector<1x128xf32>
    %50 = vector.broadcast %46 : vector<8x1xf32> to vector<8x128xf32>
    %51 = vector.broadcast %49 : vector<1x128xf32> to vector<8x128xf32>
    %52 = arith.addf %50, %51 : vector<8x128xf32>
    %cst_26 = arith.constant 2.000000e+00 : f32
    %53 = vector.broadcast %cst_26 : f32 to vector<8x128xf32>
    %54 = arith.mulf %53, %48 : vector<8x128xf32>
    %55 = arith.subf %52, %54 : vector<8x128xf32>
    %cst_27 = arith.constant 0.000000e+00 : f32
    %56 = vector.broadcast %cst_27 : f32 to vector<8x128xf32>
    %57 = arith.maximumf %55, %56 : vector<8x128xf32>
    %cst_28 = arith.constant 0.000000e+00 : f32
    %58 = vector.broadcast %cst_28 : f32 to vector<8x128xf32>
    %59 = arith.subf %58, %57 : vector<8x128xf32>
    %c0_29 = arith.constant 0 : index
    %c0_30 = arith.constant 0 : index
    %60 = vector.load %arg9[%c0_29, %c0_30] : memref<1x128xf32, #tpu.memory_space<vmem>>, vector<1x128xf32>
    %61 = vector.broadcast %60 : vector<1x128xf32> to vector<8x128xf32>
    %62 = arith.mulf %59, %61 : vector<8x128xf32>
    %63 = math.exp %62 : vector<8x128xf32>
    %c0_31 = arith.constant 0 : index
    %c0_32 = arith.constant 0 : index
    %64 = vector.load %arg10[%c0_31, %c0_32] : memref<128x128xf32, #tpu.memory_space<vmem>>, vector<128x128xf32>
    %cst_33 = arith.constant dense<0.000000e+00> : vector<8x128xf32>
    %65 = tpu.matmul %63, %64, %cst_33 {dimension_numbers = #tpu.dot_dimension_numbers<[1], [0], [0], [1], [0, 0, 1, 1], [], []>} : vector<8x128xf32>, vector<128x128xf32>, vector<8x128xf32> -> vector<8x128xf32>
    %c0_34 = arith.constant 0 : index
    %c0_35 = arith.constant 0 : index
    %66 = vector.load %arg11[%c0_34, %c0_35] : memref<1x128xf32, #tpu.memory_space<vmem>>, vector<1x128xf32>
    %67 = vector.broadcast %66 : vector<1x128xf32> to vector<8x128xf32>
    %68 = arith.addf %65, %67 : vector<8x128xf32>
    %c0_36 = arith.constant 0 : index
    %c0_37 = arith.constant 0 : index
    %69 = vector.load %arg12[%c0_36, %c0_37] : memref<8x128xf32, #tpu.memory_space<vmem>>, vector<8x128xf32>
    tpu.vector_store %arg12[%c0_36, %c0_37], %68 {strides = array<i32>} : memref<8x128xf32, #tpu.memory_space<vmem>>, vector<8x128xf32>,
    return
  }
  func.func @transform_0(%arg0: i32) -> (i32, i32) {
    %c0_i32 = arith.constant 0 : i32
    %c0_i32_0 = arith.constant 0 : i32
    %c0_i32_1 = arith.constant 0 : i32
    return %c0_i32, %c0_i32_0 : i32, i32
  }
  func.func @transform_1(%arg0: i32) -> (i32, i32) {
    %c0_i32 = arith.constant 0 : i32
    %c0_i32_0 = arith.constant 0 : i32
    %c0_i32_1 = arith.constant 0 : i32
    return %c0_i32, %c0_i32_0 : i32, i32
  }
  func.func @transform_2(%arg0: i32) -> (i32, i32) {
    %c0_i32 = arith.constant 0 : i32
    %c0_i32_0 = arith.constant 0 : i32
    %c0_i32_1 = arith.constant 0 : i32
    return %c0_i32, %c0_i32_0 : i32, i32
  }
  func.func @transform_3(%arg0: i32) -> (i32, i32) {
    %c0_i32 = arith.constant 0 : i32
    %c0_i32_0 = arith.constant 0 : i32
    %c0_i32_1 = arith.constant 0 : i32
    return %c0_i32, %c0_i32_0 : i32, i32
  }
  func.func @transform_4(%arg0: i32) -> (i32, i32) {
    %c0_i32 = arith.constant 0 : i32
    %c0_i32_0 = arith.constant 0 : i32
    %c0_i32_1 = arith.constant 0 : i32
    return %c0_i32, %c0_i32_0 : i32, i32
  }
  func.func @transform_5(%arg0: i32) -> (i32, i32) {
    %c0_i32 = arith.constant 0 : i32
    %c0_i32_0 = arith.constant 0 : i32
    %c0_i32_1 = arith.constant 0 : i32
    return %c0_i32, %c0_i32_0 : i32, i32
  }
  func.func @transform_6(%arg0: i32) -> (i32, i32) {
    %c0_i32 = arith.constant 0 : i32
    %c0_i32_0 = arith.constant 0 : i32
    %c0_i32_1 = arith.constant 0 : i32
    return %c0_i32, %c0_i32_0 : i32, i32
  }
  func.func @transform_7(%arg0: i32) -> (i32, i32) {
    %c0_i32 = arith.constant 0 : i32
    %c0_i32_0 = arith.constant 0 : i32
    %c0_i32_1 = arith.constant 0 : i32
    return %c0_i32, %c0_i32_0 : i32, i32
  }
  func.func @transform_8(%arg0: i32) -> (i32, i32) {
    %c0_i32 = arith.constant 0 : i32
    %c0_i32_0 = arith.constant 0 : i32
    %c0_i32_1 = arith.constant 0 : i32
    return %c0_i32, %c0_i32_0 : i32, i32
  }
  func.func @transform_9(%arg0: i32) -> (i32, i32) {
    %c0_i32 = arith.constant 0 : i32
    %c0_i32_0 = arith.constant 0 : i32
    %c0_i32_1 = arith.constant 0 : i32
    return %c0_i32, %c0_i32_0 : i32, i32
  }
  func.func @transform_10(%arg0: i32) -> (i32, i32) {
    %c0_i32 = arith.constant 0 : i32
    %c0_i32_0 = arith.constant 0 : i32
    %c0_i32_1 = arith.constant 0 : i32
    return %c0_i32, %c0_i32_0 : i32, i32
  }
  func.func @transform_11(%arg0: i32) -> (i32, i32) {
    %c0_i32 = arith.constant 0 : i32
    %c0_i32_0 = arith.constant 0 : i32
    %c0_i32_1 = arith.constant 0 : i32
    return %c0_i32, %c0_i32_0 : i32, i32
  }
}

</mosaic_0001>

<llo_original>
// kernel: tpu_custom_call.1
$region0: #{tpu_custom_call.1}
  #allocation0 [shape = 'u32[]', space=smem, size = 0x4, offset = 0x4, fixed_abs, tag = 'smem constant byte address 0x4 - core index']
  #allocation1 [shape = 'u32[144,128]{1,0:T(1,128)}', space=vmem, size = 0x12000, scoped, tag = 'internal scratch']
  %s0 = inlined_call_operand.hbm [shape: f32[8,16], index: 0, kind: input, shape index: {}]
  %s1 = inlined_call_operand.hbm [shape: f32[16,128], index: 1, kind: input, shape index: {}]
  %s2 = inlined_call_operand.vmem [shape: f32[1,128], index: 2, kind: input, shape index: {}]
  %s3 = inlined_call_operand.vmem [shape: f32[1,128], index: 3, kind: input, shape index: {}]
  %s4 = inlined_call_operand.hbm [shape: f32[128,128], index: 4, kind: input, shape index: {}]
  %s5 = inlined_call_operand.vmem [shape: f32[1,128], index: 5, kind: input, shape index: {}]
  %s6 = inlined_call_operand.hbm [shape: f32[128,128], index: 6, kind: input, shape index: {}]
  %s7 = inlined_call_operand.vmem [shape: f32[1,128], index: 7, kind: input, shape index: {}]
  %s8 = inlined_call_operand.vmem [shape: f32[1,128], index: 8, kind: input, shape index: {}]
  %s9 = inlined_call_operand.hbm [shape: f32[128,128], index: 9, kind: input, shape index: {}]
  %s10 = inlined_call_operand.vmem [shape: f32[1,128], index: 10, kind: input, shape index: {}]
  %s11 = inlined_call_operand.hbm [shape: f32[8,128], index: 11, kind: output, shape index: {}]
  %s12 = sld [smem:[#allocation0]]
  $region74: #{tpu_custom_call.1} parent=0
    _
  %s14 = ssub.s32 1, %s12
  %s15 = scalar_select 0, %s14, %s12
  $region1: #{tpu_custom_call.1} parent=0
    #allocation2 [shape = 'u8[4096]{0}', space=vmem, size = 0x1000, scoped, tag = 'input window, operand 0, single buffered']
    #allocation3 [shape = 's32[1]{0}', space=sflag, size = 0x4, scoped, tag = 'scoped memory for tpu_custom_call.1']
    #allocation4 [shape = 's32[1]{0}', space=sflag, size = 0x4, scoped, tag = 'scoped memory for tpu_custom_call.1']
    #allocation5 [shape = 'u8[8192]{0}', space=vmem, size = 0x2000, scoped, tag = 'input window, operand 1, single buffered']
    #allocation6 [shape = 's32[1]{0}', space=sflag, size = 0x4, scoped, tag = 'scoped memory for tpu_custom_call.1']
    #allocation7 [shape = 'u8[65536]{0}', space=vmem, size = 0x10000, scoped, tag = 'input window, operand 4, single buffered']
    #allocation8 [shape = 'u8[65536]{0}', space=vmem, size = 0x10000, scoped, tag = 'input window, operand 6, single buffered']
    #allocation9 [shape = 's32[1]{0}', space=sflag, size = 0x4, scoped, tag = 'scoped memory for tpu_custom_call.1']
    #allocation10 [shape = 'u8[65536]{0}', space=vmem, size = 0x10000, scoped, tag = 'input window, operand 9, single buffered']
    #allocation11 [shape = 'u8[4096]{0}', space=vmem, size = 0x1000, scoped, tag = 'output window, operand 0, single buffered']
    %16 = vsyncpa [#allocation3], 0
    %17 = vsyncpa [#allocation6], 0
    %18 = vsyncpa [#allocation9], 0
    %19 = vsyncpa [#allocation4], 0
    // Predicated region
    $region2: #{tpu_custom_call.1} parent=1 // pred_check
      _
    $region3: #{tpu_custom_call.1} parent=1 // pred_check_branch
      %21 = sbr.rel (0) target = $region5
    $region4: #{tpu_custom_call.1} parent=1 // pred_region
      %s23 = ssub.s32 128, 128
      %24 = vsyncadd [#allocation3], %s23
      %s26 = sshll.u32 [#allocation2], 4
      %s27 = int_to_ptr.vmem [resolvable:$true] %s26
      %29 = dma.hbm_to_vmem [thread:$0]  %s0, 128, %s27, [#allocation3]
    $region5: #{tpu_custom_call.1} parent=1 // pred_fallthru
      _
    // Predicated region
    $region6: #{tpu_custom_call.1} parent=1 // pred_check
      _
    $region7: #{tpu_custom_call.1} parent=1 // pred_check_branch
      %31 = sbr.rel (0) target = $region9
    $region8: #{tpu_custom_call.1} parent=1 // pred_region
      %s33 = ssub.s32 256, 256
      %34 = vsyncadd [#allocation6], %s33
      %s35 = sshll.u32 [#allocation5], 4
      %s36 = int_to_ptr.vmem [resolvable:$true] %s35
      %41 = dma.hbm_to_vmem [thread:$0]  %s1, 256, %s36, [#allocation6], 128, 128, 8
    $region9: #{tpu_custom_call.1} parent=1 // pred_fallthru
      _
    // Predicated region
    $region10: #{tpu_custom_call.1} parent=1 // pred_check
      _
    $region11: #{tpu_custom_call.1} parent=1 // pred_check_branch
      %43 = sbr.rel (0) target = $region13
    $region12: #{tpu_custom_call.1} parent=1 // pred_region
      _
    $region13: #{tpu_custom_call.1} parent=1 // pred_fallthru
      _
    // Predicated region
    $region14: #{tpu_custom_call.1} parent=1 // pred_check
      _
    $region15: #{tpu_custom_call.1} parent=1 // pred_check_branch
      %45 = sbr.rel (0) target = $region17
    $region16: #{tpu_custom_call.1} parent=1 // pred_region
      _
    $region17: #{tpu_custom_call.1} parent=1 // pred_fallthru
      _
    // Predicated region
    $region18: #{tpu_custom_call.1} parent=1 // pred_check
      _
    $region19: #{tpu_custom_call.1} parent=1 // pred_check_branch
      %47 = sbr.rel (0) target = $region21
    $region20: #{tpu_custom_call.1} parent=1 // pred_region
      %s49 = ssub.s32 2048, 2048
      %50 = vsyncadd [#allocation6], %s49
      %s51 = sshll.u32 [#allocation7], 4
      %s52 = int_to_ptr.vmem [resolvable:$true] %s51
      %57 = dma.hbm_to_vmem [thread:$0]  %s4, 2048, %s52, [#allocation6], 128, 128, 8
    $region21: #{tpu_custom_call.1} parent=1 // pred_fallthru
      _
    // Predicated region
    $region22: #{tpu_custom_call.1} parent=1 // pred_check
      _
    $region23: #{tpu_custom_call.1} parent=1 // pred_check_branch
      %59 = sbr.rel (0) target = $region25
    $region24: #{tpu_custom_call.1} parent=1 // pred_region
      _
    $region25: #{tpu_custom_call.1} parent=1 // pred_fallthru
      _
    // Predicated region
    $region26: #{tpu_custom_call.1} parent=1 // pred_check
      _
    $region27: #{tpu_custom_call.1} parent=1 // pred_check_branch
      %61 = sbr.rel (0) target = $region29
    $region28: #{tpu_custom_call.1} parent=1 // pred_region
      %s63 = ssub.s32 2048, 2048
      %64 = vsyncadd [#allocation9], %s63
      %s65 = sshll.u32 [#allocation8], 4
      %s66 = int_to_ptr.vmem [resolvable:$true] %s65
      %71 = dma.hbm_to_vmem [thread:$0]  %s6, 2048, %s66, [#allocation9], 128, 128, 8
    $region29: #{tpu_custom_call.1} parent=1 // pred_fallthru
      _
    // Predicated region
    $region30: #{tpu_custom_call.1} parent=1 // pred_check
      _
    $region31: #{tpu_custom_call.1} parent=1 // pred_check_branch
      %73 = sbr.rel (0) target = $region33
    $region32: #{tpu_custom_call.1} parent=1 // pred_region
      _
    $region33: #{tpu_custom_call.1} parent=1 // pred_fallthru
      _
    // Predicated region
    $region34: #{tpu_custom_call.1} parent=1 // pred_check
      _
    $region35: #{tpu_custom_call.1} parent=1 // pred_check_branch
      %75 = sbr.rel (0) target = $region37
    $region36: #{tpu_custom_call.1} parent=1 // pred_region
      _
    $region37: #{tpu_custom_call.1} parent=1 // pred_fallthru
      _
    // Predicated region
    $region38: #{tpu_custom_call.1} parent=1 // pred_check
      _
    $region39: #{tpu_custom_call.1} parent=1 // pred_check_branch
      %77 = sbr.rel (0) target = $region41
    $region40: #{tpu_custom_call.1} parent=1 // pred_region
      %s79 = ssub.s32 2048, 2048
      %80 = vsyncadd [#allocation9], %s79
      %s81 = sshll.u32 [#allocation10], 4
      %s82 = int_to_ptr.vmem [resolvable:$true] %s81
      %87 = dma.hbm_to_vmem [thread:$0]  %s9, 2048, %s82, [#allocation9], 128, 128, 8
    $region41: #{tpu_custom_call.1} parent=1 // pred_fallthru
      _
    // Predicated region
    $region42: #{tpu_custom_call.1} parent=1 // pred_check
      _
    $region43: #{tpu_custom_call.1} parent=1 // pred_check_branch
      %89 = sbr.rel (0) target = $region45
    $region44: #{tpu_custom_call.1} parent=1 // pred_region
      _
    $region45: #{tpu_custom_call.1} parent=1 // pred_fallthru
      _
    // Predicated region
    $region46: #{tpu_custom_call.1} parent=1 // pred_check
      _
    $region47: #{tpu_custom_call.1} parent=1 // pred_check_branch
      %91 = sbr.rel (0) target = $region49
    $region48: #{tpu_custom_call.1} parent=1 // pred_region
      %92 = dma.done [#allocation3], 128
    $region49: #{tpu_custom_call.1} parent=1 // pred_fallthru
      _
    // Predicated region
    $region50: #{tpu_custom_call.1} parent=1 // pred_check
      _
    $region51: #{tpu_custom_call.1} parent=1 // pred_check_branch
      %94 = sbr.rel (0) target = $region53
    $region52: #{tpu_custom_call.1} parent=1 // pred_region
      %95 = dma.done [#allocation6], 256
    $region53: #{tpu_custom_call.1} parent=1 // pred_fallthru
      _
    // Predicated region
    $region54: #{tpu_custom_call.1} parent=1 // pred_check
      _
    $region55: #{tpu_custom_call.1} parent=1 // pred_check_branch
      %97 = sbr.rel (0) target = $region57
    $region56: #{tpu_custom_call.1} parent=1 // pred_region
      %98 = dma.done [#allocation6], 2048
    $region57: #{tpu_custom_call.1} parent=1 // pred_fallthru
      _
    // Predicated region
    $region58: #{tpu_custom_call.1} parent=1 // pred_check
      _
    $region59: #{tpu_custom_call.1} parent=1 // pred_check_branch
      %100 = sbr.rel (0) target = $region61
    $region60: #{tpu_custom_call.1} parent=1 // pred_region
      %101 = dma.done [#allocation9], 2048
    $region61: #{tpu_custom_call.1} parent=1 // pred_fallthru
      _
    // Predicated region
    $region62: #{tpu_custom_call.1} parent=1 // pred_check
      _
    $region63: #{tpu_custom_call.1} parent=1 // pred_check_branch
      %103 = sbr.rel (0) target = $region65
    $region64: #{tpu_custom_call.1} parent=1 // pred_region
      %104 = dma.done [#allocation9], 2048
    $region65: #{tpu_custom_call.1} parent=1 // pred_fallthru
      _
    %v105 = vld [vmem:[#allocation2] sm:$0xff]
    %vm106 = vcmask 130048
    %v107 = vsel %vm106, %v105, 0.0
    %108 = vadd.xlane.f32.xlu0 %v107
    %v109 = vpop.xlane.xlu0 %108
    %v110 = vrot.slane %v109, 4
    %v111 = vadd.f32 %v109, %v110
    %v112 = vrot.slane %v111, 2
    %v113 = vadd.f32 %v111, %v112
    %v114 = vrot.slane %v113, 1
    %v115 = vadd.f32 %v113, %v114
    %s116 = vtos %v115
    %v117 = vrcp.pop 128.0
    %s118 = vtos %v117
    %s119 = smul.f32 %s116, %s118
    %v120 = vstv %s119
    %v121 = vsub.f32 %v105, %v120
    %v122 = vmul.f32 %v121, %v121
    %v123 = vsel %vm106, %v122, 0.0
    %124 = vadd.xlane.f32.xlu0 %v123
    %v125 = vpop.xlane.xlu0 %124
    %v126 = vrot.slane %v125, 4
    %v127 = vadd.f32 %v125, %v126
    %v128 = vrot.slane %v127, 2
    %v129 = vadd.f32 %v127, %v128
    %v130 = vrot.slane %v129, 1
    %v131 = vadd.f32 %v129, %v130
    %s132 = vtos %v131
    %v133 = vrcp.pop 127.0
    %s134 = vtos %v133
    %s135 = smul.f32 %s132, %s134
    %v136 = vstv %s135
    %v137 = vrsqrt.pop %v136
    %v138 = vmul.f32 %v136, %v137
    %vm139 = vcmp.eq.f32.partialorder %v136, inf
    %v140 = vsel %vm139, %v136, %v138
    %vm141 = vcmp.eq.f32.partialorder %v136, 0.0
    %v142 = vand.u32 %v136, 2147483648
    %v143 = vsel %vm141, %v142, %v140
    %s144 = vtos %v143
    %v145 = vstv %s144
    %v146 = vrcp.pop %v145
    %v147 = vmul.f32 %v121, %v146
    %v148 = vmul.f32 %v147, %v147
    %v149 = vsel %vm106, %v148, 0.0
    %150 = vadd.xlane.f32.xlu0 %v149
    %v151 = vpop.xlane.xlu0 %150
    %v152 = vld [vmem:[#allocation5] sm:$0xff]
    %v153 = vld [vmem:[#allocation5 + $0x8] sm:$0xff]
    %v155 = vsel %vm106, %v147, 0
    %157 = vmatprep.subr.mxu0 0.0
    %158 = vmatpush1.msra.mxu0 %v152
    %159 = vmatprep.subr.mxu0 0.0
    %160 = vmatpush1.msra.mxu0 %v153
    %161 = vmatprep.subr.mxu0 0.0
    %162 = vmatpush1.msra.mxu0 0.0
    %163 = vmatprep.subr.mxu0 0.0
    %164 = vmatpush1.msra.mxu0 0.0
    %165 = vmatprep.subr.mxu0 0.0
    %166 = vmatpush1.msra.mxu0 0.0
    %167 = vmatprep.subr.mxu0 0.0
    %168 = vmatpush1.msra.mxu0 0.0
    %169 = vmatprep.subr.mxu0 0.0
    %170 = vmatpush1.msra.mxu0 0.0
    %171 = vmatprep.subr.mxu0 0.0
    %172 = vmatpush1.msra.mxu0 0.0
    %173 = vmatprep.subr.mxu0 0.0
    %174 = vmatpush1.msra.mxu0 0.0
    %175 = vmatprep.subr.mxu0 0.0
    %176 = vmatpush1.msra.mxu0 0.0
    %177 = vmatprep.subr.mxu0 0.0
    %178 = vmatpush1.msra.mxu0 0.0
    %179 = vmatprep.subr.mxu0 0.0
    %180 = vmatpush1.msra.mxu0 0.0
    %181 = vmatprep.subr.mxu0 0.0
    %182 = vmatpush1.msra.mxu0 0.0
    %183 = vmatprep.subr.mxu0 0.0
    %184 = vmatpush1.msra.mxu0 0.0
    %185 = vmatprep.subr.mxu0 0.0
    %186 = vmatpush1.msra.mxu0 0.0
    %187 = vmatprep.subr.mxu0 0.0
    %188 = vmatpush1.msra.mxu0 0.0
    %189 = vmatprep.subr.mxu0 0.0
    %190 = vmatpush1.msra.mxu0 0.0
    %191 = vmatprep.subr.mxu0 0.0
    %192 = vmatpush1.msra.mxu0 0.0
    %193 = vmatprep.subr.mxu0 0.0
    %194 = vmatpush1.msra.mxu0 0.0
    %195 = vmatprep.subr.mxu0 0.0
    %196 = vmatpush1.msra.mxu0 0.0
    %197 = vmatprep.subr.mxu0 0.0
    %198 = vmatpush1.msra.mxu0 0.0
    %199 = vmatprep.subr.mxu0 0.0
    %200 = vmatpush1.msra.mxu0 0.0
    %201 = vmatprep.subr.mxu0 0.0
    %202 = vmatpush1.msra.mxu0 0.0
    %203 = vmatprep.subr.mxu0 0.0
    %204 = vmatpush1.msra.mxu0 0.0
    %205 = vmatprep.subr.mxu0 0.0
    %206 = vmatpush1.msra.mxu0 0.0
    %207 = vmatprep.subr.mxu0 0.0
    %208 = vmatpush1.msra.mxu0 0.0
    %209 = vmatprep.subr.mxu0 0.0
    %210 = vmatpush1.msra.mxu0 0.0
    %211 = vmatprep.subr.mxu0 0.0
    %212 = vmatpush1.msra.mxu0 0.0
    %213 = vmatprep.subr.mxu0 0.0
    %214 = vmatpush1.msra.mxu0 0.0
    %215 = vmatprep.subr.mxu0 0.0
    %216 = vmatpush1.msra.mxu0 0.0
    %217 = vmatprep.subr.mxu0 0.0
    %218 = vmatpush1.msra.mxu0 0.0
    %219 = vmatprep.subr.mxu0 0.0
    %220 = vmatpush1.msra.mxu0 0.0
    %221 = vmatprep.mubr.f32.mxu0 0.0
    %222 = vmatmul.mubr.f32.gmra.mrb[0].mxu0 %v155
    %v223 = vpop.f32.mrb[0].mxu0
    %v224 = vadd.f32 0.0, %v223
    %v225 = vpop.f32.mrb[0].mxu0
    %226 = vdwg.mxu0
    %v227 = vld [vmem:[%s2] sm:$0x1]
    %v229 = vlaneseq
    %v230 = vshrl.u32 %v229, 7
    %v231 = vsub.s32 0, %v230
    %v232 = vrot.slane %v227, %v231
    %v234 = vadd.f32 %v151, %v232
    %v235 = vmul.f32 %v224, 2.0
    %v236 = vsub.f32 %v234, %v235
    %v237 = vmax.f32 %v236, 0.0
    %v238 = vsub.f32 0.0, %v237
    %v239 = vld [vmem:[%s3] sm:$0x1]
    %v241 = vlaneseq
    %v242 = vshrl.u32 %v241, 7
    %v243 = vsub.s32 0, %v242
    %v244 = vrot.slane %v239, %v243
    %v246 = vmul.f32 %v238, %v244
    %v247 = vmul.f32 %v246, 1.442695
    %v248 = vpow.pop %v247
    %v249 = vld [vmem:[#allocation7] sm:$0xff]
    %v250 = vld [vmem:[#allocation7 + $0x8] sm:$0xff]
    %v251 = vld [vmem:[#allocation7 + $0x10] sm:$0xff]
    %v252 = vld [vmem:[#allocation7 + $0x18] sm:$0xff]
    %v253 = vld [vmem:[#allocation7 + $0x20] sm:$0xff]
    %v254 = vld [vmem:[#allocation7 + $0x28] sm:$0xff]
    %v255 = vld [vmem:[#allocation7 + $0x30] sm:$0xff]
    %v256 = vld [vmem:[#allocation7 + $0x38] sm:$0xff]
    %v257 = vld [vmem:[#allocation7 + $0x40] sm:$0xff]
    %v258 = vld [vmem:[#allocation7 + $0x48] sm:$0xff]
    %v259 = vld [vmem:[#allocation7 + $0x50] sm:$0xff]
    %v260 = vld [vmem:[#allocation7 + $0x58] sm:$0xff]
    %v261 = vld [vmem:[#allocation7 + $0x60] sm:$0xff]
    %v262 = vld [vmem:[#allocation7 + $0x68] sm:$0xff]
    %v263 = vld [vmem:[#allocation7 + $0x70] sm:$0xff]
    %v264 = vld [vmem:[#allocation7 + $0x78] sm:$0xff]
    %v265 = vld [vmem:[%s5] sm:$0x1]
    %v267 = vlaneseq
    %v268 = vshrl.u32 %v267, 7
    %v269 = vsub.s32 0, %v268
    %v270 = vrot.slane %v265, %v269
    %272 = vmatprep.subr.mxu0 0.0
    %273 = vmatpush1.msra.mxu0 %v249
    %274 = vmatprep.subr.mxu0 0.0
    %275 = vmatpush1.msra.mxu0 %v250
    %276 = vmatprep.subr.mxu0 0.0
    %277 = vmatpush1.msra.mxu0 %v251
    %278 = vmatprep.subr.mxu0 0.0
    %279 = vmatpush1.msra.mxu0 %v252
    %280 = vmatprep.subr.mxu0 0.0
    %281 = vmatpush1.msra.mxu0 %v253
    %282 = vmatprep.subr.mxu0 0.0
    %283 = vmatpush1.msra.mxu0 %v254
    %284 = vmatprep.subr.mxu0 0.0
    %285 = vmatpush1.msra.mxu0 %v255
    %286 = vmatprep.subr.mxu0 0.0
    %287 = vmatpush1.msra.mxu0 %v256
    %288 = vmatprep.subr.mxu0 0.0
    %289 = vmatpush1.msra.mxu0 %v257
    %290 = vmatprep.subr.mxu0 0.0
    %291 = vmatpush1.msra.mxu0 %v258
    %292 = vmatprep.subr.mxu0 0.0
    %293 = vmatpush1.msra.mxu0 %v259
    %294 = vmatprep.subr.mxu0 0.0
    %295 = vmatpush1.msra.mxu0 %v260
    %296 = vmatprep.subr.mxu0 0.0
    %297 = vmatpush1.msra.mxu0 %v261
    %298 = vmatprep.subr.mxu0 0.0
    %299 = vmatpush1.msra.mxu0 %v262
    %300 = vmatprep.subr.mxu0 0.0
    %301 = vmatpush1.msra.mxu0 %v263
    %302 = vmatprep.subr.mxu0 0.0
    %303 = vmatpush1.msra.mxu0 %v264
    %304 = vmatprep.subr.mxu0 0.0
    %305 = vmatpush1.msra.mxu0 0.0
    %306 = vmatprep.subr.mxu0 0.0
    %307 = vmatpush1.msra.mxu0 0.0
    %308 = vmatprep.subr.mxu0 0.0
    %309 = vmatpush1.msra.mxu0 0.0
    %310 = vmatprep.subr.mxu0 0.0
    %311 = vmatpush1.msra.mxu0 0.0
    %312 = vmatprep.subr.mxu0 0.0
    %313 = vmatpush1.msra.mxu0 0.0
    %314 = vmatprep.subr.mxu0 0.0
    %315 = vmatpush1.msra.mxu0 0.0
    %316 = vmatprep.subr.mxu0 0.0
    %317 = vmatpush1.msra.mxu0 0.0
    %318 = vmatprep.subr.mxu0 0.0
    %319 = vmatpush1.msra.mxu0 0.0
    %320 = vmatprep.subr.mxu0 0.0
    %321 = vmatpush1.msra.mxu0 0.0
    %322 = vmatprep.subr.mxu0 0.0
    %323 = vmatpush1.msra.mxu0 0.0
    %324 = vmatprep.subr.mxu0 0.0
    %325 = vmatpush1.msra.mxu0 0.0
    %326 = vmatprep.subr.mxu0 0.0
    %327 = vmatpush1.msra.mxu0 0.0
    %328 = vmatprep.subr.mxu0 0.0
    %329 = vmatpush1.msra.mxu0 0.0
    %330 = vmatprep.subr.mxu0 0.0
    %331 = vmatpush1.msra.mxu0 0.0
    %332 = vmatprep.subr.mxu0 0.0
    %333 = vmatpush1.msra.mxu0 0.0
    %334 = vmatprep.subr.mxu0 0.0
    %335 = vmatpush1.msra.mxu0 0.0
    %336 = vmatprep.mubr.f32.mxu0 0.0
    %337 = vmatmul.mubr.f32.gmra.mrb[0].mxu0 %v248
    %v338 = vpop.f32.mrb[0].mxu0
    %v339 = vadd.f32 %v270, %v338
    %v340 = vpop.f32.mrb[0].mxu0
    %341 = vdwg.mxu0
    %v342 = vmul.f32 %v339, %v339
    %343 = vadd.xlane.f32.xlu0 %v342
    %v344 = vpop.xlane.xlu0 %343
    %v345 = vld [vmem:[#allocation8] sm:$0xff]
    %v346 = vld [vmem:[#allocation8 + $0x8] sm:$0xff]
    %v347 = vld [vmem:[#allocation8 + $0x10] sm:$0xff]
    %v348 = vld [vmem:[#allocation8 + $0x18] sm:$0xff]
    %v349 = vld [vmem:[#allocation8 + $0x20] sm:$0xff]
    %v350 = vld [vmem:[#allocation8 + $0x28] sm:$0xff]
    %v351 = vld [vmem:[#allocation8 + $0x30] sm:$0xff]
    %v352 = vld [vmem:[#allocation8 + $0x38] sm:$0xff]
    %v353 = vld [vmem:[#allocation8 + $0x40] sm:$0xff]
    %v354 = vld [vmem:[#allocation8 + $0x48] sm:$0xff]
    %v355 = vld [vmem:[#allocation8 + $0x50] sm:$0xff]
    %v356 = vld [vmem:[#allocation8 + $0x58] sm:$0xff]
    %v357 = vld [vmem:[#allocation8 + $0x60] sm:$0xff]
    %v358 = vld [vmem:[#allocation8 + $0x68] sm:$0xff]
    %v359 = vld [vmem:[#allocation8 + $0x70] sm:$0xff]
    %v360 = vld [vmem:[#allocation8 + $0x78] sm:$0xff]
    %361 = vmatprep.subr.mxu0 0.0
    %362 = vmatpush1.msra.mxu0 %v345
    %363 = vmatprep.subr.mxu0 0.0
    %364 = vmatpush1.msra.mxu0 %v346
    %365 = vmatprep.subr.mxu0 0.0
    %366 = vmatpush1.msra.mxu0 %v347
    %367 = vmatprep.subr.mxu0 0.0
    %368 = vmatpush1.msra.mxu0 %v348
    %369 = vmatprep.subr.mxu0 0.0
    %370 = vmatpush1.msra.mxu0 %v349
    %371 = vmatprep.subr.mxu0 0.0
    %372 = vmatpush1.msra.mxu0 %v350
    %373 = vmatprep.subr.mxu0 0.0
    %374 = vmatpush1.msra.mxu0 %v351
    %375 = vmatprep.subr.mxu0 0.0
    %376 = vmatpush1.msra.mxu0 %v352
    %377 = vmatprep.subr.mxu0 0.0
    %378 = vmatpush1.msra.mxu0 %v353
    %379 = vmatprep.subr.mxu0 0.0
    %380 = vmatpush1.msra.mxu0 %v354
    %381 = vmatprep.subr.mxu0 0.0
    %382 = vmatpush1.msra.mxu0 %v355
    %383 = vmatprep.subr.mxu0 0.0
    %384 = vmatpush1.msra.mxu0 %v356
    %385 = vmatprep.subr.mxu0 0.0
    %386 = vmatpush1.msra.mxu0 %v357
    %387 = vmatprep.subr.mxu0 0.0
    %388 = vmatpush1.msra.mxu0 %v358
    %389 = vmatprep.subr.mxu0 0.0
    %390 = vmatpush1.msra.mxu0 %v359
    %391 = vmatprep.subr.mxu0 0.0
    %392 = vmatpush1.msra.mxu0 %v360
    %393 = vmatprep.subr.mxu0 0.0
    %394 = vmatpush1.msra.mxu0 0.0
    %395 = vmatprep.subr.mxu0 0.0
    %396 = vmatpush1.msra.mxu0 0.0
    %397 = vmatprep.subr.mxu0 0.0
    %398 = vmatpush1.msra.mxu0 0.0
    %399 = vmatprep.subr.mxu0 0.0
    %400 = vmatpush1.msra.mxu0 0.0
    %401 = vmatprep.subr.mxu0 0.0
    %402 = vmatpush1.msra.mxu0 0.0
    %403 = vmatprep.subr.mxu0 0.0
    %404 = vmatpush1.msra.mxu0 0.0
    %405 = vmatprep.subr.mxu0 0.0
    %406 = vmatpush1.msra.mxu0 0.0
    %407 = vmatprep.subr.mxu0 0.0
    %408 = vmatpush1.msra.mxu0 0.0
    %409 = vmatprep.subr.mxu0 0.0
    %410 = vmatpush1.msra.mxu0 0.0
    %411 = vmatprep.subr.mxu0 0.0
    %412 = vmatpush1.msra.mxu0 0.0
    %413 = vmatprep.subr.mxu0 0.0
    %414 = vmatpush1.msra.mxu0 0.0
    %415 = vmatprep.subr.mxu0 0.0
    %416 = vmatpush1.msra.mxu0 0.0
    %417 = vmatprep.subr.mxu0 0.0
    %418 = vmatpush1.msra.mxu0 0.0
    %419 = vmatprep.subr.mxu0 0.0
    %420 = vmatpush1.msra.mxu0 0.0
    %421 = vmatprep.subr.mxu0 0.0
    %422 = vmatpush1.msra.mxu0 0.0
    %423 = vmatprep.subr.mxu0 0.0
    %424 = vmatpush1.msra.mxu0 0.0
    %425 = vmatprep.mubr.f32.mxu0 0.0
    %426 = vmatmul.mubr.f32.gmra.mrb[0].mxu0 %v339
    %v427 = vpop.f32.mrb[0].mxu0
    %v428 = vadd.f32 0.0, %v427
    %v429 = vpop.f32.mrb[0].mxu0
    %430 = vdwg.mxu0
    %v431 = vld [vmem:[%s7] sm:$0x1]
    %v433 = vlaneseq
    %v434 = vshrl.u32 %v433, 7
    %v435 = vsub.s32 0, %v434
    %v436 = vrot.slane %v431, %v435
    %v438 = vadd.f32 %v344, %v436
    %v439 = vmul.f32 %v428, 2.0
    %v440 = vsub.f32 %v438, %v439
    %v441 = vmax.f32 %v440, 0.0
    %v442 = vsub.f32 0.0, %v441
    %v443 = vld [vmem:[%s8] sm:$0x1]
    %v445 = vlaneseq
    %v446 = vshrl.u32 %v445, 7
    %v447 = vsub.s32 0, %v446
    %v448 = vrot.slane %v443, %v447
    %v450 = vmul.f32 %v442, %v448
    %v451 = vmul.f32 %v450, 1.442695
    %v452 = vpow.pop %v451
    %v453 = vld [vmem:[#allocation10] sm:$0xff]
    %v454 = vld [vmem:[#allocation10 + $0x8] sm:$0xff]
    %v455 = vld [vmem:[#allocation10 + $0x10] sm:$0xff]
    %v456 = vld [vmem:[#allocation10 + $0x18] sm:$0xff]
    %v457 = vld [vmem:[#allocation10 + $0x20] sm:$0xff]
    %v458 = vld [vmem:[#allocation10 + $0x28] sm:$0xff]
    %v459 = vld [vmem:[#allocation10 + $0x30] sm:$0xff]
    %v460 = vld [vmem:[#allocation10 + $0x38] sm:$0xff]
    %v461 = vld [vmem:[#allocation10 + $0x40] sm:$0xff]
    %v462 = vld [vmem:[#allocation10 + $0x48] sm:$0xff]
    %v463 = vld [vmem:[#allocation10 + $0x50] sm:$0xff]
    %v464 = vld [vmem:[#allocation10 + $0x58] sm:$0xff]
    %v465 = vld [vmem:[#allocation10 + $0x60] sm:$0xff]
    %v466 = vld [vmem:[#allocation10 + $0x68] sm:$0xff]
    %v467 = vld [vmem:[#allocation10 + $0x70] sm:$0xff]
    %v468 = vld [vmem:[#allocation10 + $0x78] sm:$0xff]
    %v469 = vld [vmem:[%s10] sm:$0x1]
    %v471 = vlaneseq
    %v472 = vshrl.u32 %v471, 7
    %v473 = vsub.s32 0, %v472
    %v474 = vrot.slane %v469, %v473
    %476 = vmatprep.subr.mxu0 0.0
    %477 = vmatpush1.msra.mxu0 %v453
    %478 = vmatprep.subr.mxu0 0.0
    %479 = vmatpush1.msra.mxu0 %v454
    %480 = vmatprep.subr.mxu0 0.0
    %481 = vmatpush1.msra.mxu0 %v455
    %482 = vmatprep.subr.mxu0 0.0
    %483 = vmatpush1.msra.mxu0 %v456
    %484 = vmatprep.subr.mxu0 0.0
    %485 = vmatpush1.msra.mxu0 %v457
    %486 = vmatprep.subr.mxu0 0.0
    %487 = vmatpush1.msra.mxu0 %v458
    %488 = vmatprep.subr.mxu0 0.0
    %489 = vmatpush1.msra.mxu0 %v459
    %490 = vmatprep.subr.mxu0 0.0
    %491 = vmatpush1.msra.mxu0 %v460
    %492 = vmatprep.subr.mxu0 0.0
    %493 = vmatpush1.msra.mxu0 %v461
    %494 = vmatprep.subr.mxu0 0.0
    %495 = vmatpush1.msra.mxu0 %v462
    %496 = vmatprep.subr.mxu0 0.0
    %497 = vmatpush1.msra.mxu0 %v463
    %498 = vmatprep.subr.mxu0 0.0
    %499 = vmatpush1.msra.mxu0 %v464
    %500 = vmatprep.subr.mxu0 0.0
    %501 = vmatpush1.msra.mxu0 %v465
    %502 = vmatprep.subr.mxu0 0.0
    %503 = vmatpush1.msra.mxu0 %v466
    %504 = vmatprep.subr.mxu0 0.0
    %505 = vmatpush1.msra.mxu0 %v467
    %506 = vmatprep.subr.mxu0 0.0
    %507 = vmatpush1.msra.mxu0 %v468
    %508 = vmatprep.subr.mxu0 0.0
    %509 = vmatpush1.msra.mxu0 0.0
    %510 = vmatprep.subr.mxu0 0.0
    %511 = vmatpush1.msra.mxu0 0.0
    %512 = vmatprep.subr.mxu0 0.0
    %513 = vmatpush1.msra.mxu0 0.0
    %514 = vmatprep.subr.mxu0 0.0
    %515 = vmatpush1.msra.mxu0 0.0
    %516 = vmatprep.subr.mxu0 0.0
    %517 = vmatpush1.msra.mxu0 0.0
    %518 = vmatprep.subr.mxu0 0.0
    %519 = vmatpush1.msra.mxu0 0.0
    %520 = vmatprep.subr.mxu0 0.0
    %521 = vmatpush1.msra.mxu0 0.0
    %522 = vmatprep.subr.mxu0 0.0
    %523 = vmatpush1.msra.mxu0 0.0
    %524 = vmatprep.subr.mxu0 0.0
    %525 = vmatpush1.msra.mxu0 0.0
    %526 = vmatprep.subr.mxu0 0.0
    %527 = vmatpush1.msra.mxu0 0.0
    %528 = vmatprep.subr.mxu0 0.0
    %529 = vmatpush1.msra.mxu0 0.0
    %530 = vmatprep.subr.mxu0 0.0
    %531 = vmatpush1.msra.mxu0 0.0
    %532 = vmatprep.subr.mxu0 0.0
    %533 = vmatpush1.msra.mxu0 0.0
    %534 = vmatprep.subr.mxu0 0.0
    %535 = vmatpush1.msra.mxu0 0.0
    %536 = vmatprep.subr.mxu0 0.0
    %537 = vmatpush1.msra.mxu0 0.0
    %538 = vmatprep.subr.mxu0 0.0
    %539 = vmatpush1.msra.mxu0 0.0
    %540 = vmatprep.mubr.f32.mxu0 0.0
    %541 = vmatmul.mubr.f32.gmra.mrb[0].mxu0 %v452
    %v542 = vpop.f32.mrb[0].mxu0
    %v543 = vadd.f32 %v474, %v542
    %v544 = vpop.f32.mrb[0].mxu0
    %545 = vdwg.mxu0
    %546 = vst [vmem:[#allocation11] sm:$0xff] %v543
    // Predicated region
    $region66: #{tpu_custom_call.1} parent=1 // pred_check
      _
    $region67: #{tpu_custom_call.1} parent=1 // pred_check_branch
      %548 = sbr.rel (0) target = $region69
    $region68: #{tpu_custom_call.1} parent=1 // pred_region
      %s550 = ssub.s32 128, 128
      %551 = vsyncadd [#allocation4], %s550
      %s553 = sshll.u32 [#allocation11], 4
      %s554 = int_to_ptr.vmem [resolvable:$true] %s553
      %556 = dma.vmem_to_hbm [thread:$0]  %s554, 128, %s11, [#allocation4]
    $region69: #{tpu_custom_call.1} parent=1 // pred_fallthru
      _
    // Predicated region
    $region70: #{tpu_custom_call.1} parent=1 // pred_check
      _
    $region71: #{tpu_custom_call.1} parent=1 // pred_check_branch
      %558 = sbr.rel (0) target = $region73
    $region72: #{tpu_custom_call.1} parent=1 // pred_region
      %559 = dma.done [#allocation4], 128
    $region73: #{tpu_custom_call.1} parent=1 // pred_fallthru
      _
    %560 = vsyncpa [#allocation3], 1
    %561 = vsyncpa [#allocation6], 1
    %562 = vsyncpa [#allocation9], 1
    %563 = vsyncpa [#allocation4], 1

</llo_original>
